<compile_context>
chip_gen: v7x
topology: tpu7x:2x2x1
jax: 0.10.0
libtpu: 0.0.40
codegen_flags: <defaults>
</compile_context>

<pallas_src>
import functools

import jax
import jax.numpy as jnp
import numpy as np
from jax.experimental import pallas as pl
from jax.experimental.pallas import tpu as pltpu


# ----------------------------------------------------------------------------
# Fused Pallas kernel: whole batch in one step, everything lane-dense (H*W).
# ----------------------------------------------------------------------------
def _hfarh_kernel(x_ref, wtap_ref, gate_ref,       # VMEM inputs
                  w1_ref, w3_ref, wf_ref,          # SMEM scalar weights
                  o_ref,                           # VMEM output (N*C, H*W)
                  *, N, C, H, W):
    f32 = jnp.float32
    HW = H * W

    # --- conv1 (C -> 1, 1x1, no bias): channel reduction with SMEM scalars ---
    u_rows = []
    for n in range(N):
        un = w1_ref[0] * x_ref[pl.ds(n * C, 1), :].astype(f32)       # (1, HW)
        for c in range(1, C):
            un = un + w1_ref[c] * x_ref[pl.ds(n * C + c, 1), :].astype(f32)
        u_rows.append(un)
    u = jnp.concatenate(u_rows, axis=0)                              # (N, HW)

    # --- conv2 (1->C, 3x3, pad 1) + conv1 (C->1, 1x1) folded into a single
    #     single-channel 3x3 stencil.  Taps are in-register lane shifts of the
    #     flattened row; zero padding and the folded tap weight are baked into
    #     wtap[t] = w_eff[t] * border_mask[t] (built in the wrapper). ---------
    acc = jnp.zeros((N, HW), f32)
    t = 0
    for dh in (-1, 0, 1):
        for dw in (-1, 0, 1):
            off = dh * W + dw
            if off == 0:
                shifted = u
            else:
                k = off % HW
                # shifted[:, i] = u[:, (i + off) % HW]; wrapped lanes are
                # zeroed by the border mask folded into wtap.
                shifted = jnp.concatenate([u[:, k:], u[:, :k]], axis=1)
            acc = acc + wtap_ref[pl.ds(t, 1), :] * shifted
            t += 1
    r = jnp.maximum(acc, 0.0)                                        # ReLU

    # --- FCAH collapsed: everything between r and the sigmoid input
    #     (fft -> gaussian filter -> ifft -> mean(Re)+mean(Im) -> 1x1 conv)
    #     is linear, so it is a single weighted sum with a precomputed gate. ---
    m = jnp.sum(r * gate_ref[...], axis=1, keepdims=True)            # (N, 1)
    s = jax.nn.sigmoid(wf_ref[0] * m)                                # (N, 1)
    fc = r * s                                                       # (N, HW)

    # --- conv3 (1 -> C, 1x1): per-channel scale, assembled into one dense
    #     (N*C, HW) slab so the write-out is a single full-width store. -------
    out_rows = []
    for n in range(N):
        fcn = fc[n:n + 1, :]                                         # (1, HW)
        for c in range(C):
            out_rows.append(w3_ref[c] * fcn)
    o_ref[...] = jnp.concatenate(out_rows, axis=0).astype(o_ref.dtype)


# ----------------------------------------------------------------------------
# Host-side constant tables
# ----------------------------------------------------------------------------
def _fca_filter_np(H, W):
    """Exactly the numpy gaussian low-pass filter built inside FCAH.forward."""
    assert H == W  # TODO(synk): FCAH crop path for H != W not implemented
    cutoff = 0.1
    fi = np.fft.fftfreq(H, d=1.0)
    fj = np.fft.fftfreq(H, d=1.0)
    ii, jj = np.meshgrid(fi, fj)
    dist = np.sqrt(ii ** 2 + jj ** 2)
    return np.exp(-dist ** 2 / (2.0 * (cutoff / 2.0) ** 2))[:H, :W]


def make_fca_filter(H, W):
    return jnp.asarray(_fca_filter_np(H, W), jnp.float32)


def make_fca_gate(H, W):
    """Collapse FCAH's fft -> filter -> ifft -> mean(Re)+mean(Im) (all linear)
    into one (1, H*W) gate so that  m = sum(gate * r_flat)  inside the kernel."""
    filt = _fca_filter_np(H, W)                                 # (H, W) float64
    n = np.arange(W)
    E = np.exp(-2j * np.pi * np.outer(n, n) / W)                # forward DFT (w -> k)
    Einv = np.exp(+2j * np.pi * np.outer(n, n) / W)             # inverse DFT (k -> n)
    col = Einv @ np.ones(W)                                     # sum over output pos n
    G = np.zeros((H, W))
    for h in range(H):
        v = (E * filt[h][None, :]) @ col / W                    # d(sum_n z_hn)/d r[h,:]
        G[h] = np.real(v) + np.imag(v)
    G /= (H * W)                                                # the two spatial means
    return jnp.asarray(G.reshape(1, H * W), jnp.float32)


def make_tap_masks(H, W):
    """(9, H*W) 0/1 masks: tap t = (dh+1)*3+(dw+1) is valid at flattened pos i
    iff the (h+dh, w+dw) neighbour lies inside the image (zero padding)."""
    row = np.arange(H * W) // W
    col = np.arange(H * W) % W
    masks = []
    for dh in (-1, 0, 1):
        for dw in (-1, 0, 1):
            ok = ((row + dh >= 0) & (row + dh < H) &
                  (col + dw >= 0) & (col + dw < W))
            masks.append(ok.astype(np.float32))
    return jnp.asarray(np.stack(masks, axis=0))


# ----------------------------------------------------------------------------
# Wrapper
# ----------------------------------------------------------------------------
@jax.jit
def hfarh_forward(x, params):
    N, C, H, W = x.shape
    HW = H * W

    # Constants (built from static shapes at trace time).
    gate = make_fca_gate(H, W)                                  # (1, HW)
    tap_masks = make_tap_masks(H, W)                            # (9, HW)

    # Fold conv2 (1->C,3x3) with the second conv1 (C->1,1x1): w_eff = w1 @ w2,
    # and bake the zero-padding border masks in:  wtap[t] = w_eff[t] * mask[t].
    w_eff = jnp.einsum("c,ckl->kl", params["w1"], params["w2"]).reshape(9)
    wtap = w_eff[:, None] * tap_masks                           # (9, HW)

    kernel = functools.partial(_hfarh_kernel, N=N, C=C, H=H, W=W)
    smem = pl.BlockSpec(memory_space=pltpu.MemorySpace.SMEM)
    out_flat = pl.pallas_call(
        kernel,
        out_shape=jax.ShapeDtypeStruct((N * C, HW), x.dtype),
        grid=(1,),
        in_specs=[
            pl.BlockSpec((N * C, HW), lambda i: (0, 0)),        # x, lane-dense
            pl.BlockSpec((9, HW), lambda i: (0, 0)),            # folded 3x3 taps*masks
            pl.BlockSpec((1, HW), lambda i: (0, 0)),            # FCAH gate
            smem,                                               # w1   (C,)
            smem,                                               # w3   (C,)
            smem,                                               # w_fca (1,)
        ],
        out_specs=pl.BlockSpec((N * C, HW), lambda i: (0, 0)),
        compiler_params=pltpu.CompilerParams(
            dimension_semantics=("arbitrary",)),
    )(x.reshape(N * C, HW), wtap, gate,
      params["w1"], params["w3"], params["w_fca"])
    return out_flat.reshape(N, C, H, W)


# ----------------------------------------------------------------------------
# Deterministic parameters
# ----------------------------------------------------------------------------
def init_hfarh_params(key, c):
    k1, k2, k3, k4 = jax.random.split(key, 4)
    return {
        "w1": 0.3 * jax.random.normal(k1, (c,), jnp.float32),        # conv1 (1,c,1,1)
        "w2": 0.3 * jax.random.normal(k2, (c, 3, 3), jnp.float32),   # conv2 (c,1,3,3)
        "w3": 0.3 * jax.random.normal(k3, (c,), jnp.float32),        # conv3 (c,1,1,1)
        "w_fca": 0.3 * jax.random.normal(k4, (1,), jnp.float32),     # fca.conv (1,1,1,1)
    }


# ----------------------------------------------------------------------------
# Pure-JAX reference (uses the real FFT) for the correctness check
# ----------------------------------------------------------------------------
def hfarh_reference(x, params, filt):
    w1, w2, w3 = params["w1"], params["w2"], params["w3"]
    wf = params["w_fca"][0]
    N, C, H, W = x.shape
    hi = jax.lax.Precision.HIGHEST

    u = jnp.einsum("nchw,c->nhw", x, w1, precision=hi)[:, None, :, :]   # conv1
    k2 = w2.reshape(C, 1, 3, 3)
    v = jax.lax.conv_general_dilated(
        u, k2, (1, 1), ((1, 1), (1, 1)),
        dimension_numbers=("NCHW", "OIHW", "NCHW"), precision=hi)       # conv2
    u2 = jnp.einsum("nchw,c->nhw", v, w1, precision=hi)[:, None, :, :]  # conv1
    r = jax.nn.relu(u2)

    # FCAH
    t = jnp.fft.fft(r.astype(jnp.complex64), axis=-1)
    fd = jnp.fft.ifft(t * filt.astype(jnp.complex64), axis=-1)
    avg = (jnp.mean(jnp.real(fd), axis=(2, 3), keepdims=True)
           + jnp.mean(jnp.imag(fd), axis=(2, 3), keepdims=True))
    s = jax.nn.sigmoid(wf * avg)

    fc = r * s
    return w3[None, :, None, None] * fc                                 # conv3


# ----------------------------------------------------------------------------
if __name__ == "__main__":
    N, C, H, W = 2, 4, 16, 16      # HFARH(in_chanl=4), batch=2, 16x16 spatial

    key = jax.random.PRNGKey(0)
    kx, kp = jax.random.split(key)
    x = jax.random.normal(kx, (N, C, H, W), jnp.float32)   # NCHW like PyTorch
    params = init_hfarh_params(kp, C)

    out = jax.block_until_ready(hfarh_forward(x, params))
    ref = jax.block_until_ready(hfarh_reference(x, params, make_fca_filter(H, W)))

    assert out.shape == (N, C, H, W), out.shape
    np.testing.assert_allclose(np.asarray(out), np.asarray(ref),
                               rtol=1e-3, atol=1e-5)
    print("KERNEL_OK")
</pallas_src>

<mosaic_0001>
module attributes {stable_mosaic.version = 11 : i64} {
  func.func @_hfarh_kernel(%arg0: i32, %arg1: memref<8x256xf32, #tpu.memory_space<vmem>>, %arg2: memref<9x256xf32, #tpu.memory_space<vmem>>, %arg3: memref<1x256xf32, #tpu.memory_space<vmem>>, %arg4: memref<4xf32, #tpu.memory_space<smem>>, %arg5: memref<4xf32, #tpu.memory_space<smem>>, %arg6: memref<1xf32, #tpu.memory_space<smem>>, %arg7: memref<8x256xf32, #tpu.memory_space<vmem>>) attributes {dimension_semantics = [#tpu.dimension_semantics<arbitrary>], iteration_bounds = array<i64: 1>, scalar_prefetch = 0 : i64, scratch_operands = 0 : i64, tpu.core_type = #tpu.core_type<tc>, window_params = [{pipeline_mode = #tpu.pipeline_mode<synchronous>, transform_indices = @transform_0, window_bounds = array<i64: 8, 256>}, {pipeline_mode = #tpu.pipeline_mode<synchronous>, transform_indices = @transform_1, window_bounds = array<i64: 9, 256>}, {pipeline_mode = #tpu.pipeline_mode<synchronous>, transform_indices = @transform_2, window_bounds = array<i64: 1, 256>}, {transform_indices = @transform_3, window_bounds = array<i64: 4>}, {transform_indices = @transform_4, window_bounds = array<i64: 4>}, {transform_indices = @transform_5, window_bounds = array<i64: 1>}, {pipeline_mode = #tpu.pipeline_mode<synchronous>, transform_indices = @transform_6, window_bounds = array<i64: 8, 256>}]} {
    %c0 = arith.constant 0 : index
    %0 = memref.load %arg4[%c0] : memref<4xf32, #tpu.memory_space<smem>>
    %c0_0 = arith.constant 0 : index
    %c0_1 = arith.constant 0 : index
    %1 = vector.load %arg1[%c0_0, %c0_1] : memref<8x256xf32, #tpu.memory_space<vmem>>, vector<1x256xf32>
    %2 = vector.broadcast %0 : f32 to vector<1x256xf32>
    %3 = arith.mulf %2, %1 : vector<1x256xf32>
    %c1 = arith.constant 1 : index
    %4 = memref.load %arg4[%c1] : memref<4xf32, #tpu.memory_space<smem>>
    %c1_2 = arith.constant 1 : index
    %c0_3 = arith.constant 0 : index
    %5 = vector.load %arg1[%c1_2, %c0_3] : memref<8x256xf32, #tpu.memory_space<vmem>>, vector<1x256xf32>
    %6 = vector.broadcast %4 : f32 to vector<1x256xf32>
    %7 = arith.mulf %6, %5 : vector<1x256xf32>
    %8 = arith.addf %3, %7 : vector<1x256xf32>
    %c2 = arith.constant 2 : index
    %9 = memref.load %arg4[%c2] : memref<4xf32, #tpu.memory_space<smem>>
    %c2_4 = arith.constant 2 : index
    %c0_5 = arith.constant 0 : index
    %10 = vector.load %arg1[%c2_4, %c0_5] : memref<8x256xf32, #tpu.memory_space<vmem>>, vector<1x256xf32>
    %11 = vector.broadcast %9 : f32 to vector<1x256xf32>
    %12 = arith.mulf %11, %10 : vector<1x256xf32>
    %13 = arith.addf %8, %12 : vector<1x256xf32>
    %c3 = arith.constant 3 : index
    %14 = memref.load %arg4[%c3] : memref<4xf32, #tpu.memory_space<smem>>
    %c3_6 = arith.constant 3 : index
    %c0_7 = arith.constant 0 : index
    %15 = vector.load %arg1[%c3_6, %c0_7] : memref<8x256xf32, #tpu.memory_space<vmem>>, vector<1x256xf32>
    %16 = vector.broadcast %14 : f32 to vector<1x256xf32>
    %17 = arith.mulf %16, %15 : vector<1x256xf32>
    %18 = arith.addf %13, %17 : vector<1x256xf32>
    %c0_8 = arith.constant 0 : index
    %19 = memref.load %arg4[%c0_8] : memref<4xf32, #tpu.memory_space<smem>>
    %c4 = arith.constant 4 : index
    %c0_9 = arith.constant 0 : index
    %20 = vector.load %arg1[%c4, %c0_9] : memref<8x256xf32, #tpu.memory_space<vmem>>, vector<1x256xf32>
    %21 = vector.broadcast %19 : f32 to vector<1x256xf32>
    %22 = arith.mulf %21, %20 : vector<1x256xf32>
    %c1_10 = arith.constant 1 : index
    %23 = memref.load %arg4[%c1_10] : memref<4xf32, #tpu.memory_space<smem>>
    %c5 = arith.constant 5 : index
    %c0_11 = arith.constant 0 : index
    %24 = vector.load %arg1[%c5, %c0_11] : memref<8x256xf32, #tpu.memory_space<vmem>>, vector<1x256xf32>
    %25 = vector.broadcast %23 : f32 to vector<1x256xf32>
    %26 = arith.mulf %25, %24 : vector<1x256xf32>
    %27 = arith.addf %22, %26 : vector<1x256xf32>
    %c2_12 = arith.constant 2 : index
    %28 = memref.load %arg4[%c2_12] : memref<4xf32, #tpu.memory_space<smem>>
    %c6 = arith.constant 6 : index
    %c0_13 = arith.constant 0 : index
    %29 = vector.load %arg1[%c6, %c0_13] : memref<8x256xf32, #tpu.memory_space<vmem>>, vector<1x256xf32>
    %30 = vector.broadcast %28 : f32 to vector<1x256xf32>
    %31 = arith.mulf %30, %29 : vector<1x256xf32>
    %32 = arith.addf %27, %31 : vector<1x256xf32>
    %c3_14 = arith.constant 3 : index
    %33 = memref.load %arg4[%c3_14] : memref<4xf32, #tpu.memory_space<smem>>
    %c7 = arith.constant 7 : index
    %c0_15 = arith.constant 0 : index
    %34 = vector.load %arg1[%c7, %c0_15] : memref<8x256xf32, #tpu.memory_space<vmem>>, vector<1x256xf32>
    %35 = vector.broadcast %33 : f32 to vector<1x256xf32>
    %36 = arith.mulf %35, %34 : vector<1x256xf32>
    %37 = arith.addf %32, %36 : vector<1x256xf32>
    %38 = tpu.concatenate %18, %37 in 0 : vector<1x256xf32>, vector<1x256xf32> -> vector<2x256xf32>
    %cst = arith.constant 0.000000e+00 : f32
    %39 = vector.broadcast %cst : f32 to vector<2x256xf32>
    %40 = vector.extract_strided_slice %38 {offsets = [0, 239], sizes = [2, 17], strides = [1, 1]} : vector<2x256xf32> to vector<2x17xf32>
    %41 = vector.extract_strided_slice %38 {offsets = [0, 0], sizes = [2, 239], strides = [1, 1]} : vector<2x256xf32> to vector<2x239xf32>
    %42 = tpu.concatenate %40, %41 in 1 : vector<2x17xf32>, vector<2x239xf32> -> vector<2x256xf32>
    %c0_16 = arith.constant 0 : index
    %c0_17 = arith.constant 0 : index
    %43 = vector.load %arg2[%c0_16, %c0_17] : memref<9x256xf32, #tpu.memory_space<vmem>>, vector<1x256xf32>
    %44 = vector.broadcast %43 : vector<1x256xf32> to vector<2x256xf32>
    %45 = arith.mulf %44, %42 : vector<2x256xf32>
    %46 = arith.addf %39, %45 : vector<2x256xf32>
    %47 = vector.extract_strided_slice %38 {offsets = [0, 240], sizes = [2, 16], strides = [1, 1]} : vector<2x256xf32> to vector<2x16xf32>
    %48 = vector.extract_strided_slice %38 {offsets = [0, 0], sizes = [2, 240], strides = [1, 1]} : vector<2x256xf32> to vector<2x240xf32>
    %49 = tpu.concatenate %47, %48 in 1 : vector<2x16xf32>, vector<2x240xf32> -> vector<2x256xf32>
    %c1_18 = arith.constant 1 : index
    %c0_19 = arith.constant 0 : index
    %50 = vector.load %arg2[%c1_18, %c0_19] : memref<9x256xf32, #tpu.memory_space<vmem>>, vector<1x256xf32>
    %51 = vector.broadcast %50 : vector<1x256xf32> to vector<2x256xf32>
    %52 = arith.mulf %51, %49 : vector<2x256xf32>
    %53 = arith.addf %46, %52 : vector<2x256xf32>
    %54 = vector.extract_strided_slice %38 {offsets = [0, 241], sizes = [2, 15], strides = [1, 1]} : vector<2x256xf32> to vector<2x15xf32>
    %55 = vector.extract_strided_slice %38 {offsets = [0, 0], sizes = [2, 241], strides = [1, 1]} : vector<2x256xf32> to vector<2x241xf32>
    %56 = tpu.concatenate %54, %55 in 1 : vector<2x15xf32>, vector<2x241xf32> -> vector<2x256xf32>
    %c2_20 = arith.constant 2 : index
    %c0_21 = arith.constant 0 : index
    %57 = vector.load %arg2[%c2_20, %c0_21] : memref<9x256xf32, #tpu.memory_space<vmem>>, vector<1x256xf32>
    %58 = vector.broadcast %57 : vector<1x256xf32> to vector<2x256xf32>
    %59 = arith.mulf %58, %56 : vector<2x256xf32>
    %60 = arith.addf %53, %59 : vector<2x256xf32>
    %61 = vector.extract_strided_slice %38 {offsets = [0, 255], sizes = [2, 1], strides = [1, 1]} : vector<2x256xf32> to vector<2x1xf32>
    %62 = vector.extract_strided_slice %38 {offsets = [0, 0], sizes = [2, 255], strides = [1, 1]} : vector<2x256xf32> to vector<2x255xf32>
    %63 = tpu.concatenate %61, %62 in 1 : vector<2x1xf32>, vector<2x255xf32> -> vector<2x256xf32>
    %c3_22 = arith.constant 3 : index
    %c0_23 = arith.constant 0 : index
    %64 = vector.load %arg2[%c3_22, %c0_23] : memref<9x256xf32, #tpu.memory_space<vmem>>, vector<1x256xf32>
    %65 = vector.broadcast %64 : vector<1x256xf32> to vector<2x256xf32>
    %66 = arith.mulf %65, %63 : vector<2x256xf32>
    %67 = arith.addf %60, %66 : vector<2x256xf32>
    %c4_24 = arith.constant 4 : index
    %c0_25 = arith.constant 0 : index
    %68 = vector.load %arg2[%c4_24, %c0_25] : memref<9x256xf32, #tpu.memory_space<vmem>>, vector<1x256xf32>
    %69 = vector.broadcast %68 : vector<1x256xf32> to vector<2x256xf32>
    %70 = arith.mulf %69, %38 : vector<2x256xf32>
    %71 = arith.addf %67, %70 : vector<2x256xf32>
    %72 = vector.extract_strided_slice %38 {offsets = [0, 1], sizes = [2, 255], strides = [1, 1]} : vector<2x256xf32> to vector<2x255xf32>
    %73 = vector.extract_strided_slice %38 {offsets = [0, 0], sizes = [2, 1], strides = [1, 1]} : vector<2x256xf32> to vector<2x1xf32>
    %74 = tpu.concatenate %72, %73 in 1 : vector<2x255xf32>, vector<2x1xf32> -> vector<2x256xf32>
    %c5_26 = arith.constant 5 : index
    %c0_27 = arith.constant 0 : index
    %75 = vector.load %arg2[%c5_26, %c0_27] : memref<9x256xf32, #tpu.memory_space<vmem>>, vector<1x256xf32>
    %76 = vector.broadcast %75 : vector<1x256xf32> to vector<2x256xf32>
    %77 = arith.mulf %76, %74 : vector<2x256xf32>
    %78 = arith.addf %71, %77 : vector<2x256xf32>
    %79 = vector.extract_strided_slice %38 {offsets = [0, 15], sizes = [2, 241], strides = [1, 1]} : vector<2x256xf32> to vector<2x241xf32>
    %80 = vector.extract_strided_slice %38 {offsets = [0, 0], sizes = [2, 15], strides = [1, 1]} : vector<2x256xf32> to vector<2x15xf32>
    %81 = tpu.concatenate %79, %80 in 1 : vector<2x241xf32>, vector<2x15xf32> -> vector<2x256xf32>
    %c6_28 = arith.constant 6 : index
    %c0_29 = arith.constant 0 : index
    %82 = vector.load %arg2[%c6_28, %c0_29] : memref<9x256xf32, #tpu.memory_space<vmem>>, vector<1x256xf32>
    %83 = vector.broadcast %82 : vector<1x256xf32> to vector<2x256xf32>
    %84 = arith.mulf %83, %81 : vector<2x256xf32>
    %85 = arith.addf %78, %84 : vector<2x256xf32>
    %86 = vector.extract_strided_slice %38 {offsets = [0, 16], sizes = [2, 240], strides = [1, 1]} : vector<2x256xf32> to vector<2x240xf32>
    %87 = vector.extract_strided_slice %38 {offsets = [0, 0], sizes = [2, 16], strides = [1, 1]} : vector<2x256xf32> to vector<2x16xf32>
    %88 = tpu.concatenate %86, %87 in 1 : vector<2x240xf32>, vector<2x16xf32> -> vector<2x256xf32>
    %c7_30 = arith.constant 7 : index
    %c0_31 = arith.constant 0 : index
    %89 = vector.load %arg2[%c7_30, %c0_31] : memref<9x256xf32, #tpu.memory_space<vmem>>, vector<1x256xf32>
    %90 = vector.broadcast %89 : vector<1x256xf32> to vector<2x256xf32>
    %91 = arith.mulf %90, %88 : vector<2x256xf32>
    %92 = arith.addf %85, %91 : vector<2x256xf32>
    %93 = vector.extract_strided_slice %38 {offsets = [0, 17], sizes = [2, 239], strides = [1, 1]} : vector<2x256xf32> to vector<2x239xf32>
    %94 = vector.extract_strided_slice %38 {offsets = [0, 0], sizes = [2, 17], strides = [1, 1]} : vector<2x256xf32> to vector<2x17xf32>
    %95 = tpu.concatenate %93, %94 in 1 : vector<2x239xf32>, vector<2x17xf32> -> vector<2x256xf32>
    %c8 = arith.constant 8 : index
    %c0_32 = arith.constant 0 : index
    %96 = vector.load %arg2[%c8, %c0_32] : memref<9x256xf32, #tpu.memory_space<vmem>>, vector<1x256xf32>
    %97 = vector.broadcast %96 : vector<1x256xf32> to vector<2x256xf32>
    %98 = arith.mulf %97, %95 : vector<2x256xf32>
    %99 = arith.addf %92, %98 : vector<2x256xf32>
    %cst_33 = arith.constant 0.000000e+00 : f32
    %100 = vector.broadcast %cst_33 : f32 to vector<2x256xf32>
    %101 = arith.maximumf %99, %100 : vector<2x256xf32>
    %c0_34 = arith.constant 0 : index
    %c0_35 = arith.constant 0 : index
    %102 = vector.load %arg3[%c0_34, %c0_35] : memref<1x256xf32, #tpu.memory_space<vmem>>, vector<1x256xf32>
    %103 = vector.broadcast %102 : vector<1x256xf32> to vector<2x256xf32>
    %104 = arith.mulf %101, %103 : vector<2x256xf32>
    %cst_36 = arith.constant dense<0.000000e+00> : vector<2xf32>
    %105 = vector.multi_reduction <add>, %104, %cst_36 [1] : vector<2x256xf32> to vector<2xf32>
    %106 = vector.shape_cast %105 : vector<2xf32> to vector<2x1xf32>
    %c0_37 = arith.constant 0 : index
    %107 = memref.load %arg6[%c0_37] : memref<1xf32, #tpu.memory_space<smem>>
    %108 = vector.broadcast %107 : f32 to vector<2x1xf32>
    %109 = arith.mulf %108, %106 : vector<2x1xf32>
    %110 = arith.negf %109 : vector<2x1xf32>
    %111 = math.exp %110 : vector<2x1xf32>
    %cst_38 = arith.constant 1.000000e+00 : f32
    %112 = vector.broadcast %cst_38 : f32 to vector<2x1xf32>
    %113 = arith.addf %112, %111 : vector<2x1xf32>
    %114 = arith.divf %112, %113 : vector<2x1xf32>
    %115 = vector.broadcast %114 : vector<2x1xf32> to vector<2x256xf32>
    %116 = arith.mulf %101, %115 : vector<2x256xf32>
    %117 = vector.extract_strided_slice %116 {offsets = [0, 0], sizes = [1, 256], strides = [1, 1]} : vector<2x256xf32> to vector<1x256xf32>
    %c0_39 = arith.constant 0 : index
    %118 = memref.load %arg5[%c0_39] : memref<4xf32, #tpu.memory_space<smem>>
    %119 = vector.broadcast %118 : f32 to vector<1x256xf32>
    %120 = arith.mulf %119, %117 : vector<1x256xf32>
    %c1_40 = arith.constant 1 : index
    %121 = memref.load %arg5[%c1_40] : memref<4xf32, #tpu.memory_space<smem>>
    %122 = vector.broadcast %121 : f32 to vector<1x256xf32>
    %123 = arith.mulf %122, %117 : vector<1x256xf32>
    %c2_41 = arith.constant 2 : index
    %124 = memref.load %arg5[%c2_41] : memref<4xf32, #tpu.memory_space<smem>>
    %125 = vector.broadcast %124 : f32 to vector<1x256xf32>
    %126 = arith.mulf %125, %117 : vector<1x256xf32>
    %c3_42 = arith.constant 3 : index
    %127 = memref.load %arg5[%c3_42] : memref<4xf32, #tpu.memory_space<smem>>
    %128 = vector.broadcast %127 : f32 to vector<1x256xf32>
    %129 = arith.mulf %128, %117 : vector<1x256xf32>
    %130 = vector.extract_strided_slice %116 {offsets = [1, 0], sizes = [1, 256], strides = [1, 1]} : vector<2x256xf32> to vector<1x256xf32>
    %c0_43 = arith.constant 0 : index
    %131 = memref.load %arg5[%c0_43] : memref<4xf32, #tpu.memory_space<smem>>
    %132 = vector.broadcast %131 : f32 to vector<1x256xf32>
    %133 = arith.mulf %132, %130 : vector<1x256xf32>
    %c1_44 = arith.constant 1 : index
    %134 = memref.load %arg5[%c1_44] : memref<4xf32, #tpu.memory_space<smem>>
    %135 = vector.broadcast %134 : f32 to vector<1x256xf32>
    %136 = arith.mulf %135, %130 : vector<1x256xf32>
    %c2_45 = arith.constant 2 : index
    %137 = memref.load %arg5[%c2_45] : memref<4xf32, #tpu.memory_space<smem>>
    %138 = vector.broadcast %137 : f32 to vector<1x256xf32>
    %139 = arith.mulf %138, %130 : vector<1x256xf32>
    %c3_46 = arith.constant 3 : index
    %140 = memref.load %arg5[%c3_46] : memref<4xf32, #tpu.memory_space<smem>>
    %141 = vector.broadcast %140 : f32 to vector<1x256xf32>
    %142 = arith.mulf %141, %130 : vector<1x256xf32>
    %143 = tpu.concatenate %120, %123, %126, %129, %133, %136, %139, %142 in 0 : vector<1x256xf32>, vector<1x256xf32>, vector<1x256xf32>, vector<1x256xf32>, vector<1x256xf32>, vector<1x256xf32>, vector<1x256xf32>, vector<1x256xf32> -> vector<8x256xf32>
    %c0_47 = arith.constant 0 : index
    %c0_48 = arith.constant 0 : index
    %144 = vector.load %arg7[%c0_47, %c0_48] : memref<8x256xf32, #tpu.memory_space<vmem>>, vector<8x256xf32>
    tpu.vector_store %arg7[%c0_47, %c0_48], %143 {strides = array<i32>} : memref<8x256xf32, #tpu.memory_space<vmem>>, vector<8x256xf32>,
    return
  }
  func.func @transform_0(%arg0: i32) -> (i32, i32) {
    %c0_i32 = arith.constant 0 : i32
    %c0_i32_0 = arith.constant 0 : i32
    %c0_i32_1 = arith.constant 0 : i32
    return %c0_i32, %c0_i32_0 : i32, i32
  }
  func.func @transform_1(%arg0: i32) -> (i32, i32) {
    %c0_i32 = arith.constant 0 : i32
    %c0_i32_0 = arith.constant 0 : i32
    %c0_i32_1 = arith.constant 0 : i32
    return %c0_i32, %c0_i32_0 : i32, i32
  }
  func.func @transform_2(%arg0: i32) -> (i32, i32) {
    %c0_i32 = arith.constant 0 : i32
    %c0_i32_0 = arith.constant 0 : i32
    %c0_i32_1 = arith.constant 0 : i32
    return %c0_i32, %c0_i32_0 : i32, i32
  }
  func.func @transform_3(%arg0: i32) -> i32 {
    %c0_i32 = arith.constant 0 : i32
    %c0_i32_0 = arith.constant 0 : i32
    return %c0_i32 : i32
  }
  func.func @transform_4(%arg0: i32) -> i32 {
    %c0_i32 = arith.constant 0 : i32
    %c0_i32_0 = arith.constant 0 : i32
    return %c0_i32 : i32
  }
  func.func @transform_5(%arg0: i32) -> i32 {
    %c0_i32 = arith.constant 0 : i32
    %c0_i32_0 = arith.constant 0 : i32
    return %c0_i32 : i32
  }
  func.func @transform_6(%arg0: i32) -> (i32, i32) {
    %c0_i32 = arith.constant 0 : i32
    %c0_i32_0 = arith.constant 0 : i32
    %c0_i32_1 = arith.constant 0 : i32
    return %c0_i32, %c0_i32_0 : i32, i32
  }
}

</mosaic_0001>

<llo_original>
// kernel: mul.5
$region0: #{mul.5}
  %s0 = inlined_call_operand.vmem [shape: f32[3,3], index: 0, kind: input, shape index: {}]
  %s1 = inlined_call_operand.vmem [shape: f32[9], index: 1, kind: output, shape index: {}]
  $region1: #{mul.5} parent=0
    #allocation0 [shape = 'u8[4096]{0}', space=vmem, size = 0x1000, scoped, tag = 'scoped mem for output reshape']
    #allocation1 [shape = 'u8[4096]{0}', space=vmem, size = 0x1000, scoped, tag = 'scoped mem for input reshape']
    %s3 = sshllo.u32 0, 4
    %v4 = vld [vmem:[%s0] sm:%s3]
    %5 = vst [vmem:[#allocation1] sm:%s3] %v4
    %v6 = vld [vmem:[#allocation1] sm:$0x1]
    %vm7 = vcmask 23552
    %8 = vst.msk [vmem:[#allocation0] sm:$0x1] %vm7, %v6
    %s9 = scalar_lea.vmem [#allocation1], 2
    %v10 = vld [vmem:[%s9] sm:$0x1]
    %11 = vrot.lane.b32.xlu0 %v10, 6
    %v12 = vpop.permute.xlu0 %11
    %vm13 = vcmask 72752
    %14 = vst.msk [vmem:[#allocation0] sm:$0x1] %vm13, %v12
    %s15 = scalar_lea.vmem [#allocation1], 1
    %v16 = vld [vmem:[%s15] sm:$0x1]
    %17 = vrot.lane.b32.xlu0 %v16, 3
    %v18 = vpop.permute.xlu0 %17
    %vm19 = vcmask 48152
    %20 = vst.msk [vmem:[#allocation0] sm:$0x1] %vm19, %v18
    %s22 = sshllo.u32 0, 1
    %v24 = vld [vmem:[#allocation0] sm:%s22]
    %s25 = sshllo.u32 0, 1
    %26 = vst [vmem:[%s1] sm:%s25] %v24

// kernel: hfarh_forward.1
$region0: #{hfarh_forward.1}
  #allocation0 [shape = 'u32[]', space=smem, size = 0x4, offset = 0x4, fixed_abs, tag = 'smem constant byte address 0x4 - core index']
  #allocation1 [shape = 'u32[144,128]{1,0:T(1,128)}', space=vmem, size = 0x12000, scoped, tag = 'internal scratch']
  #allocation2 [shape = 'f32[1]{0:T(128)S(6)}', space=smem, size = 0x200, scoped, tag = 'scoped memory for hfarh_forward.1']
  %s0 = inlined_call_operand.vmem [shape: f32[8,256], index: 0, kind: input, shape index: {}]
  %s1 = inlined_call_operand.vmem [shape: f32[9,256], index: 1, kind: input, shape index: {}]
  %s2 = inlined_call_operand.vmem [shape: f32[1,256], index: 2, kind: input, shape index: {}]
  %s3 = inlined_call_operand.vmem [shape: f32[4], index: 3, kind: input, shape index: {}]
  %s4 = inlined_call_operand.vmem [shape: f32[4], index: 4, kind: input, shape index: {}]
  %s5 = inlined_call_operand.<no memory space> [shape: f32[1], index: 5, kind: input, shape index: {}]
  %s6 = inlined_call_operand.vmem [shape: f32[8,256], index: 6, kind: output, shape index: {}]
  %s7 = sld [smem:[#allocation0]]
  $region42: #{hfarh_forward.1} parent=0
    _
  %s9 = ssub.s32 1, %s7
  %s10 = scalar_select 0, %s9, %s7
  %11 = sst [smem:[#allocation2]] %s5
  $region1: #{hfarh_forward.1} parent=0
    #allocation3 [shape = 'u8[512]{0}', space=smem, size = 0x200, scoped, tag = 'input window, operand 3, single buffered']
    #allocation4 [shape = 's32[1]{0}', space=sflag, size = 0x4, scoped, tag = 'scoped memory for hfarh_forward.1']
    #allocation5 [shape = 'u8[512]{0}', space=smem, size = 0x200, scoped, tag = 'input window, operand 4, single buffered']
    #allocation6 [shape = 's32[1]{0}', space=sflag, size = 0x4, scoped, tag = 'scoped memory for hfarh_forward.1']
    %12 = vsyncpa [#allocation4], 0
    %13 = vsyncpa [#allocation6], 0
    // Predicated region
    $region2: #{hfarh_forward.1} parent=1 // pred_check
      _
    $region3: #{hfarh_forward.1} parent=1 // pred_check_branch
      %15 = sbr.rel (0) target = $region5
    $region4: #{hfarh_forward.1} parent=1 // pred_region
      _
    $region5: #{hfarh_forward.1} parent=1 // pred_fallthru
      _
    // Predicated region
    $region6: #{hfarh_forward.1} parent=1 // pred_check
      _
    $region7: #{hfarh_forward.1} parent=1 // pred_check_branch
      %17 = sbr.rel (0) target = $region9
    $region8: #{hfarh_forward.1} parent=1 // pred_region
      _
    $region9: #{hfarh_forward.1} parent=1 // pred_fallthru
      _
    // Predicated region
    $region10: #{hfarh_forward.1} parent=1 // pred_check
      _
    $region11: #{hfarh_forward.1} parent=1 // pred_check_branch
      %19 = sbr.rel (0) target = $region13
    $region12: #{hfarh_forward.1} parent=1 // pred_region
      _
    $region13: #{hfarh_forward.1} parent=1 // pred_fallthru
      _
    // Predicated region
    $region14: #{hfarh_forward.1} parent=1 // pred_check
      _
    $region15: #{hfarh_forward.1} parent=1 // pred_check_branch
      %21 = sbr.rel (0) target = $region17
    $region16: #{hfarh_forward.1} parent=1 // pred_region
      %s23 = ssub.s32 16, 16
      %24 = vsyncadd [#allocation4], %s23
      %s26 = sshll.u32 %s3, 4
      %s27 = int_to_ptr.vmem [resolvable:$true] %s26
      %29 = dma.vmem_to_smem %s27, 16, [#allocation3], [#allocation4]
    $region17: #{hfarh_forward.1} parent=1 // pred_fallthru
      _
    // Predicated region
    $region18: #{hfarh_forward.1} parent=1 // pred_check
      _
    $region19: #{hfarh_forward.1} parent=1 // pred_check_branch
      %31 = sbr.rel (0) target = $region21
    $region20: #{hfarh_forward.1} parent=1 // pred_region
      %s33 = ssub.s32 16, 16
      %34 = vsyncadd [#allocation6], %s33
      %s36 = sshll.u32 %s4, 4
      %s37 = int_to_ptr.vmem [resolvable:$true] %s36
      %39 = dma.vmem_to_smem %s37, 16, [#allocation5], [#allocation6]
    $region21: #{hfarh_forward.1} parent=1 // pred_fallthru
      _
    // Predicated region
    $region22: #{hfarh_forward.1} parent=1 // pred_check
      _
    $region23: #{hfarh_forward.1} parent=1 // pred_check_branch
      %41 = sbr.rel (0) target = $region25
    $region24: #{hfarh_forward.1} parent=1 // pred_region
      _
    $region25: #{hfarh_forward.1} parent=1 // pred_fallthru
      _
    // Predicated region
    $region26: #{hfarh_forward.1} parent=1 // pred_check
      _
    $region27: #{hfarh_forward.1} parent=1 // pred_check_branch
      %43 = sbr.rel (0) target = $region29
    $region28: #{hfarh_forward.1} parent=1 // pred_region
      %44 = dma.done [#allocation4], 16
    $region29: #{hfarh_forward.1} parent=1 // pred_fallthru
      _
    // Predicated region
    $region30: #{hfarh_forward.1} parent=1 // pred_check
      _
    $region31: #{hfarh_forward.1} parent=1 // pred_check_branch
      %46 = sbr.rel (0) target = $region33
    $region32: #{hfarh_forward.1} parent=1 // pred_region
      %47 = dma.done [#allocation6], 16
    $region33: #{hfarh_forward.1} parent=1 // pred_fallthru
      _
    %48 = sfence
    %s49 = sld [smem:[#allocation3]]
    %v50 = vld [vmem:[%s0] ss:$8 sm:$0x3]
    %v51 = vstv %s49
    %v52 = vmul.f32 %v51, %v50
    %s53 = sld [smem:[#allocation3 + $0x1]]
    %s54 = scalar_lea.vmem %s0, 1
    %v55 = vld [vmem:[%s54] ss:$8 sm:$0x3]
    %v56 = vstv %s53
    %v57 = vmul.f32 %v56, %v55
    %v58 = vadd.f32 %v52, %v57
    %s59 = sld [smem:[#allocation3 + $0x2]]
    %s60 = scalar_lea.vmem %s0, 2
    %v61 = vld [vmem:[%s60] ss:$8 sm:$0x3]
    %v62 = vstv %s59
    %v63 = vmul.f32 %v62, %v61
    %v64 = vadd.f32 %v58, %v63
    %s65 = sld [smem:[#allocation3 + $0x3]]
    %s66 = scalar_lea.vmem %s0, 3
    %v67 = vld [vmem:[%s66] ss:$8 sm:$0x3]
    %v68 = vstv %s65
    %v69 = vmul.f32 %v68, %v67
    %v70 = vadd.f32 %v64, %v69
    %s71 = scalar_lea.vmem %s0, 4
    %v72 = vld [vmem:[%s71] ss:$8 sm:$0x3]
    %v73 = vmul.f32 %v51, %v72
    %s74 = scalar_lea.vmem %s0, 5
    %v75 = vld [vmem:[%s74] ss:$8 sm:$0x3]
    %v76 = vmul.f32 %v56, %v75
    %v77 = vadd.f32 %v73, %v76
    %s78 = scalar_lea.vmem %s0, 6
    %v79 = vld [vmem:[%s78] ss:$8 sm:$0x3]
    %v80 = vmul.f32 %v62, %v79
    %v81 = vadd.f32 %v77, %v80
    %s82 = scalar_lea.vmem %s0, 7
    %v83 = vld [vmem:[%s82] ss:$8 sm:$0x3]
    %v84 = vmul.f32 %v68, %v83
    %v85 = vadd.f32 %v81, %v84
    %v87 = vlaneseq
    %v88 = vshrl.u32 %v87, 7
    %v89 = vsub.s32 0, %v88
    %v90 = vrot.slane %v70, %v89
    %v91 = vlaneseq
    %v92 = vshrl.u32 %v91, 7
    %v93 = vsub.s32 1, %v92
    %v94 = vrot.slane %v70, %v93
    %v98 = vlaneseq
    %v99 = vshrl.u32 %v98, 7
    %v100 = vsub.s32 0, %v99
    %v101 = vrot.slane %v85, %v100
    %v102 = vlaneseq
    %v103 = vshrl.u32 %v102, 7
    %v104 = vsub.s32 1, %v103
    %v105 = vrot.slane %v85, %v104
    %vm108 = vcmask 1040384
    %v109 = vsel %vm108, %v90, %v101
    %v110 = vsel %vm108, %v94, %v105
    %112 = vrot.lane.b32.xlu0 %v110, 17
    %v113 = vpop.permute.xlu0 %112
    %116 = vrot.lane.b32.xlu0 %v109, 17
    %v117 = vpop.permute.xlu0 %116
    %vm118 = vcmask 138240
    %v119 = vsel %vm118, %v117, %v113
    %v122 = vsel %vm118, %v113, %v117
    %v123 = vld [vmem:[%s1] ss:$8 sm:$0x3]
    %v125 = vlaneseq
    %v126 = vshrl.u32 %v125, 7
    %v127 = vsub.s32 0, %v126
    %v128 = vrot.slane %v123, %v127
    %v129 = vlaneseq
    %v130 = vshrl.u32 %v129, 7
    %v131 = vsub.s32 1, %v130
    %v132 = vrot.slane %v123, %v131
    %v135 = vmul.f32 %v128, %v122
    %v136 = vmul.f32 %v132, %v119
    %v137 = vadd.f32 %v135, 0.0
    %v138 = vadd.f32 %v136, 0.0
    %139 = vrot.lane.b32.xlu0 %v110, 16
    %v140 = vpop.permute.xlu0 %139
    %142 = vrot.lane.b32.xlu0 %v109, 16
    %v143 = vpop.permute.xlu0 %142
    %vm144 = vcmask 130048
    %v145 = vsel %vm144, %v143, %v140
    %v148 = vsel %vm144, %v140, %v143
    %s149 = scalar_lea.vmem %s1, 1
    %v150 = vld [vmem:[%s149] ss:$8 sm:$0x3]
    %v152 = vlaneseq
    %v153 = vshrl.u32 %v152, 7
    %v154 = vsub.s32 0, %v153
    %v155 = vrot.slane %v150, %v154
    %v156 = vlaneseq
    %v157 = vshrl.u32 %v156, 7
    %v158 = vsub.s32 1, %v157
    %v159 = vrot.slane %v150, %v158
    %v162 = vmul.f32 %v155, %v148
    %v163 = vmul.f32 %v159, %v145
    %v164 = vadd.f32 %v137, %v162
    %v165 = vadd.f32 %v138, %v163
    %166 = vrot.lane.b32.xlu0 %v110, 15
    %v167 = vpop.permute.xlu0 %166
    %169 = vrot.lane.b32.xlu0 %v109, 15
    %v170 = vpop.permute.xlu0 %169
    %vm171 = vcmask 121856
    %v172 = vsel %vm171, %v170, %v167
    %v175 = vsel %vm171, %v167, %v170
    %s176 = scalar_lea.vmem %s1, 2
    %v177 = vld [vmem:[%s176] ss:$8 sm:$0x3]
    %v179 = vlaneseq
    %v180 = vshrl.u32 %v179, 7
    %v181 = vsub.s32 0, %v180
    %v182 = vrot.slane %v177, %v181
    %v183 = vlaneseq
    %v184 = vshrl.u32 %v183, 7
    %v185 = vsub.s32 1, %v184
    %v186 = vrot.slane %v177, %v185
    %v189 = vmul.f32 %v182, %v175
    %v190 = vmul.f32 %v186, %v172
    %v191 = vadd.f32 %v164, %v189
    %v192 = vadd.f32 %v165, %v190
    %193 = vrot.lane.b32.xlu0 %v110, 1
    %v194 = vpop.permute.xlu0 %193
    %196 = vrot.lane.b32.xlu0 %v109, 1
    %v197 = vpop.permute.xlu0 %196
    %vm198 = vcmask 7168
    %v199 = vsel %vm198, %v197, %v194
    %v202 = vsel %vm198, %v194, %v197
    %s203 = scalar_lea.vmem %s1, 3
    %v204 = vld [vmem:[%s203] ss:$8 sm:$0x3]
    %v206 = vlaneseq
    %v207 = vshrl.u32 %v206, 7
    %v208 = vsub.s32 0, %v207
    %v209 = vrot.slane %v204, %v208
    %v210 = vlaneseq
    %v211 = vshrl.u32 %v210, 7
    %v212 = vsub.s32 1, %v211
    %v213 = vrot.slane %v204, %v212
    %v216 = vmul.f32 %v209, %v202
    %v217 = vmul.f32 %v213, %v199
    %v218 = vadd.f32 %v191, %v216
    %v219 = vadd.f32 %v192, %v217
    %s220 = scalar_lea.vmem %s1, 4
    %v221 = vld [vmem:[%s220] ss:$8 sm:$0x3]
    %v223 = vlaneseq
    %v224 = vshrl.u32 %v223, 7
    %v225 = vsub.s32 0, %v224
    %v226 = vrot.slane %v221, %v225
    %v227 = vlaneseq
    %v228 = vshrl.u32 %v227, 7
    %v229 = vsub.s32 1, %v228
    %v230 = vrot.slane %v221, %v229
    %v233 = vmul.f32 %v226, %v109
    %v234 = vmul.f32 %v230, %v110
    %v235 = vadd.f32 %v218, %v233
    %v236 = vadd.f32 %v219, %v234
    %237 = vrot.lane.b32.xlu0 %v109, 127
    %v238 = vpop.permute.xlu0 %237
    %239 = vrot.lane.b32.xlu0 %v110, 127
    %v240 = vpop.permute.xlu0 %239
    %vm241 = vcmask 1039360
    %v242 = vsel %vm241, %v238, %v240
    %v246 = vsel %vm241, %v240, %v238
    %s247 = scalar_lea.vmem %s1, 5
    %v248 = vld [vmem:[%s247] ss:$8 sm:$0x3]
    %v250 = vlaneseq
    %v251 = vshrl.u32 %v250, 7
    %v252 = vsub.s32 0, %v251
    %v253 = vrot.slane %v248, %v252
    %v254 = vlaneseq
    %v255 = vshrl.u32 %v254, 7
    %v256 = vsub.s32 1, %v255
    %v257 = vrot.slane %v248, %v256
    %v260 = vmul.f32 %v253, %v242
    %v261 = vmul.f32 %v257, %v246
    %v262 = vadd.f32 %v235, %v260
    %v263 = vadd.f32 %v236, %v261
    %264 = vrot.lane.b32.xlu0 %v109, 113
    %v265 = vpop.permute.xlu0 %264
    %266 = vrot.lane.b32.xlu0 %v110, 113
    %v267 = vpop.permute.xlu0 %266
    %vm268 = vcmask 924672
    %v269 = vsel %vm268, %v265, %v267
    %v273 = vsel %vm268, %v267, %v265
    %s274 = scalar_lea.vmem %s1, 6
    %v275 = vld [vmem:[%s274] ss:$8 sm:$0x3]
    %v277 = vlaneseq
    %v278 = vshrl.u32 %v277, 7
    %v279 = vsub.s32 0, %v278
    %v280 = vrot.slane %v275, %v279
    %v281 = vlaneseq
    %v282 = vshrl.u32 %v281, 7
    %v283 = vsub.s32 1, %v282
    %v284 = vrot.slane %v275, %v283
    %v287 = vmul.f32 %v280, %v269
    %v288 = vmul.f32 %v284, %v273
    %v289 = vadd.f32 %v262, %v287
    %v290 = vadd.f32 %v263, %v288
    %291 = vrot.lane.b32.xlu0 %v109, 112
    %v292 = vpop.permute.xlu0 %291
    %293 = vrot.lane.b32.xlu0 %v110, 112
    %v294 = vpop.permute.xlu0 %293
    %vm295 = vcmask 916480
    %v296 = vsel %vm295, %v292, %v294
    %v300 = vsel %vm295, %v294, %v292
    %s301 = scalar_lea.vmem %s1, 7
    %v302 = vld [vmem:[%s301] ss:$8 sm:$0x3]
    %v304 = vlaneseq
    %v305 = vshrl.u32 %v304, 7
    %v306 = vsub.s32 0, %v305
    %v307 = vrot.slane %v302, %v306
    %v308 = vlaneseq
    %v309 = vshrl.u32 %v308, 7
    %v310 = vsub.s32 1, %v309
    %v311 = vrot.slane %v302, %v310
    %v314 = vmul.f32 %v307, %v296
    %v315 = vmul.f32 %v311, %v300
    %v316 = vadd.f32 %v289, %v314
    %v317 = vadd.f32 %v290, %v315
    %318 = vrot.lane.b32.xlu0 %v109, 111
    %v319 = vpop.permute.xlu0 %318
    %320 = vrot.lane.b32.xlu0 %v110, 111
    %v321 = vpop.permute.xlu0 %320
    %vm322 = vcmask 908288
    %v323 = vsel %vm322, %v319, %v321
    %v327 = vsel %vm322, %v321, %v319
    %s328 = scalar_lea.vmem %s1, 16
    %v329 = vld [vmem:[%s328] ss:$8 sm:$0x3]
    %v331 = vlaneseq
    %v332 = vshrl.u32 %v331, 7
    %v333 = vsub.s32 0, %v332
    %v334 = vrot.slane %v329, %v333
    %v335 = vlaneseq
    %v336 = vshrl.u32 %v335, 7
    %v337 = vsub.s32 1, %v336
    %v338 = vrot.slane %v329, %v337
    %v341 = vmul.f32 %v334, %v323
    %v342 = vmul.f32 %v338, %v327
    %v343 = vadd.f32 %v316, %v341
    %v344 = vadd.f32 %v317, %v342
    %v345 = vmax.f32 %v343, 0.0
    %v346 = vmax.f32 %v344, 0.0
    %v347 = vld [vmem:[%s2] sm:$0x3]
    %v349 = vlaneseq
    %v350 = vshrl.u32 %v349, 7
    %v351 = vsub.s32 0, %v350
    %v352 = vrot.slane %v347, %v351
    %v353 = vlaneseq
    %v354 = vshrl.u32 %v353, 7
    %v355 = vsub.s32 1, %v354
    %v356 = vrot.slane %v347, %v355
    %v359 = vmul.f32 %v345, %v352
    %v360 = vmul.f32 %v346, %v356
    %vm361 = vcmask 1041408
    %v362 = vsel %vm361, %v359, 0.0
    %v363 = vsel %vm361, %v360, 0.0
    %v364 = vadd.f32 %v362, %v363
    %365 = vadd.xlane.f32.xlu0 %v364
    %v366 = vpop.xlane.xlu0 %365
    %s367 = sld [smem:[#allocation2]]
    %v368 = vstv %s367
    %v369 = vmul.f32 %v368, %v366
    %v370 = vxor.u32 %v369, 2147483648
    %v371 = vmul.f32 %v370, 1.442695
    %v372 = vpow.pop %v371
    %v373 = vadd.f32 %v372, 1.0
    %v374 = vrcp.pop %v373
    %v375 = vmul.f32 1.0, %v374
    %v376 = vmul.f32 %v345, %v375
    %v377 = vmul.f32 %v346, %v375
    %s378 = sld [smem:[#allocation5]]
    %v379 = vstv %s378
    %v380 = vmul.f32 %v379, %v376
    %v381 = vmul.f32 %v379, %v377
    %s382 = sld [smem:[#allocation5 + $0x1]]
    %v383 = vstv %s382
    %v384 = vmul.f32 %v383, %v376
    %v385 = vmul.f32 %v383, %v377
    %s386 = sld [smem:[#allocation5 + $0x2]]
    %v387 = vstv %s386
    %v388 = vmul.f32 %v387, %v376
    %v389 = vmul.f32 %v387, %v377
    %s390 = sld [smem:[#allocation5 + $0x3]]
    %v391 = vstv %s390
    %v392 = vmul.f32 %v391, %v376
    %v393 = vmul.f32 %v391, %v377
    %v396 = vrot.slane %v384, 7
    %v397 = vrot.slane %v385, 7
    %v402 = vrot.slane %v388, 6
    %v403 = vrot.slane %v389, 6
    %v408 = vrot.slane %v392, 5
    %v409 = vrot.slane %v393, 5
    %v414 = vrot.slane %v380, 5
    %v415 = vrot.slane %v381, 5
    %v418 = vrot.slane %v384, 4
    %v419 = vrot.slane %v385, 4
    %v422 = vrot.slane %v388, 3
    %v423 = vrot.slane %v389, 3
    %v426 = vrot.slane %v392, 2
    %v427 = vrot.slane %v393, 2
    %v430 = vsel %vm108, %v380, %v396
    %v431 = vsel %vm108, %v381, %v397
    %v432 = vsel %vm361, %v430, %v402
    %v433 = vsel %vm361, %v431, %v403
    %vm434 = vcmask 1042432
    %v435 = vsel %vm434, %v432, %v408
    %v436 = vsel %vm434, %v433, %v409
    %vm437 = vcmask 1043456
    %v438 = vsel %vm437, %v435, %v414
    %v439 = vsel %vm437, %v436, %v415
    %vm440 = vcmask 1044480
    %v441 = vsel %vm440, %v438, %v418
    %v442 = vsel %vm440, %v439, %v419
    %vm443 = vcmask 1045504
    %v444 = vsel %vm443, %v441, %v422
    %v445 = vsel %vm443, %v442, %v423
    %vm446 = vcmask 1046528
    %v447 = vsel %vm446, %v444, %v426
    %v448 = vsel %vm446, %v445, %v427
    %449 = vst [vmem:[%s6] sm:$0xff] %v447
    %450 = vst [vmem:[%s6 + $0x8] sm:$0xff] %v448
    // Predicated region
    $region34: #{hfarh_forward.1} parent=1 // pred_check
      _
    $region35: #{hfarh_forward.1} parent=1 // pred_check_branch
      %452 = sbr.rel (0) target = $region37
    $region36: #{hfarh_forward.1} parent=1 // pred_region
      _
    $region37: #{hfarh_forward.1} parent=1 // pred_fallthru
      _
    // Predicated region
    $region38: #{hfarh_forward.1} parent=1 // pred_check
      _
    $region39: #{hfarh_forward.1} parent=1 // pred_check_branch
      %454 = sbr.rel (0) target = $region41
    $region40: #{hfarh_forward.1} parent=1 // pred_region
      _
    $region41: #{hfarh_forward.1} parent=1 // pred_fallthru
      _
    %455 = vsyncpa [#allocation4], 1
    %456 = vsyncpa [#allocation6], 1

</llo_original>
